<compile_context>
chip_gen: v7x
topology: tpu7x:2x2x1
jax: 0.10.0
libtpu: 0.0.40
codegen_flags: <defaults>
</compile_context>

<pallas_src>
import math

import jax
import jax.numpy as jnp
from jax.experimental import pallas as pl
from jax.experimental.pallas import tpu as pltpu


_TARGET_BLOCK_BYTES = 2 << 20   # ~2 MiB f32 per grid step (roofline sweet spot)
_LANE = 128                     # vreg lane width
_SUBLANE = 8                    # f32 sublane multiple


def _range_normalize_kernel(x_ref, mult_ref, add_ref, out_ref):
    # Fused elementwise FMA on the VPU; (1, L) mult/add broadcast over all rows.
    xf = x_ref[...].astype(jnp.float32)
    out_ref[...] = (xf * mult_ref[...] + add_ref[...]).astype(out_ref.dtype)


def _round_up(v, m):
    return ((v + m - 1) // m) * m


def _range_normalize_pallas(x, mult, add, *, donate_input=False):
    """out[i, j] = x[i, j] * mult[j] + add[j], computed in f32, cast to x.dtype."""
    n, d = x.shape
    out_dtype = x.dtype

    # ---- lane-dense packing --------------------------------------------------
    # For D < 128, flatten row-major and re-tile at lane_w = lcm(D, 128) lanes:
    # every row of the packed layout starts at a flat index that is a multiple
    # of D, so column-of-origin == lane % D and the per-column affine pattern
    # tiles exactly across the 128-lane-aligned row.  Stores become unmasked.
    if d < _LANE:
        lane_w = math.lcm(d, _LANE)
    else:
        lane_w = d                 # D >= 128: keep (N, D); full-dim block is legal.
    pack = lane_w // d
    mult_l = jnp.tile(mult.astype(jnp.float32), pack).reshape(1, lane_w)
    add_l = jnp.tile(add.astype(jnp.float32), pack).reshape(1, lane_w)

    # ---- row tiling (packed layout) ------------------------------------------
    total = n * d
    rows = max(int(pl.cdiv(total, lane_w)), 1)
    bytes_per_row = lane_w * 4
    target_rows = max(_SUBLANE,
                      (_TARGET_BLOCK_BYTES // bytes_per_row) // _SUBLANE * _SUBLANE)
    steps = int(pl.cdiv(rows, target_rows))
    tile_rows = _round_up(int(pl.cdiv(rows, steps)), _SUBLANE)  # balanced, sublane-aligned
    rows_pad = tile_rows * steps                                # blocks tile array exactly

    xp = x.reshape(total)
    pad = rows_pad * lane_w - total
    if pad:
        xp = jnp.pad(xp, (0, pad))
    xp = xp.reshape(rows_pad, lane_w)

    io_aliases = {0: 0} if (donate_input and xp.dtype == out_dtype) else {}

    out = pl.pallas_call(
        _range_normalize_kernel,
        out_shape=jax.ShapeDtypeStruct((rows_pad, lane_w), out_dtype),
        grid_spec=pltpu.PrefetchScalarGridSpec(
            num_scalar_prefetch=0,
            grid=(steps,),
            in_specs=[
                pl.BlockSpec((tile_rows, lane_w), lambda i: (i, 0)),  # x row tile
                pl.BlockSpec((1, lane_w), lambda i: (0, 0)),          # mult (VMEM-resident)
                pl.BlockSpec((1, lane_w), lambda i: (0, 0)),          # add  (VMEM-resident)
            ],
            out_specs=pl.BlockSpec((tile_rows, lane_w), lambda i: (i, 0)),
        ),
        compiler_params=pltpu.CompilerParams(
            dimension_semantics=("parallel",)),
        input_output_aliases=io_aliases,
    )(xp, mult_l, add_l)

    out = out.reshape(rows_pad * lane_w)
    if pad:
        out = out[:total]
    return out.reshape(n, d)


class RangeNormalizer:
    """JAX/Pallas port of the PyTorch RangeNormalizer.

    Args:
        shapes (tuple): maximal values per input dimension (e.g. (H, W, T)).
    """

    def __init__(self, shapes: tuple):
        # buffer: normalizer = tensor(shapes).float() - 1
        # NOTE: a shape entry of 1 gives normalizer == 0 (div-by-zero), same
        # hazard as the PyTorch original.
        self.normalizer = jnp.asarray(shapes, dtype=jnp.float32) - 1.0

    def __call__(self, x, dst=(0, 1), dims=(0, 1, 2)):
        return self.forward(x, dst=dst, dims=dims)

    def forward(self, x, dst=(0, 1), dims=(0, 1, 2)):
        d = x.shape[1]
        dims_arr = jnp.asarray(list(dims), dtype=jnp.int32)
        scale = jnp.float32(dst[1] - dst[0])
        mult = jnp.ones((d,), jnp.float32).at[dims_arr].set(
            scale / self.normalizer[dims_arr])
        add = jnp.zeros((d,), jnp.float32).at[dims_arr].set(jnp.float32(dst[0]))
        return _range_normalize_pallas(x, mult, add)

    def unnormalize(self, normalized_x, src=(0, 1), dims=(0, 1, 2)):
        d = normalized_x.shape[1]
        dims_arr = jnp.asarray(list(dims), dtype=jnp.int32)
        # x[:, dims] = (nx[:, dims] - src0) / (src1 - src0) * normalizer[dims]
        inv = jnp.float32(1.0 / (src[1] - src[0]))
        col_mult = inv * self.normalizer[dims_arr]
        mult = jnp.ones((d,), jnp.float32).at[dims_arr].set(col_mult)
        add = jnp.zeros((d,), jnp.float32).at[dims_arr].set(
            -jnp.float32(src[0]) * col_mult)
        return _range_normalize_pallas(normalized_x, mult, add)


if __name__ == "__main__":
    # Deterministic synthetic setup: pixel coords & time for a 16x16x8 volume,
    # plus extra untouched feature columns (D=8, only dims [0,1,2] normalized).
    shapes = (16, 16, 8)          # (H, W, T)
    N, D = 16, 8                  # 16 samples, 8 columns

    key = jax.random.PRNGKey(0)
    kx, ke = jax.random.split(key)
    maxvals = jnp.asarray([s - 1 for s in shapes], dtype=jnp.float32)
    coords = jax.random.uniform(kx, (N, 3), dtype=jnp.float32) * maxvals
    extras = jax.random.normal(ke, (N, D - 3), dtype=jnp.float32)
    x = jnp.concatenate([coords, extras], axis=1)

    normalizer_mod = RangeNormalizer(shapes)
    out = jax.block_until_ready(normalizer_mod(x, dst=(0, 1), dims=[0, 1, 2]))

    # Reference check in plain JAX (mirrors the PyTorch forward exactly).
    norm = jnp.asarray(shapes, jnp.float32) - 1.0
    ref = x.at[:, :3].set((1.0 - 0.0) * (x[:, :3] / norm) + 0.0)
    assert out.shape == x.shape and out.dtype == jnp.float32
    assert jnp.allclose(out, ref, atol=1e-6, rtol=1e-6)

    # Round-trip via unnormalize.
    back = jax.block_until_ready(normalizer_mod.unnormalize(out))
    assert jnp.allclose(back, x, atol=1e-5, rtol=1e-5)

    # Second case: D=3 (the typical coord-only layout; exercises lcm packing).
    x3 = coords
    out3 = jax.block_until_ready(normalizer_mod(x3, dst=(-1, 1), dims=[0, 1, 2]))
    ref3 = 2.0 * (x3 / norm) - 1.0
    assert jnp.allclose(out3, ref3, atol=1e-5, rtol=1e-5)
    back3 = jax.block_until_ready(
        normalizer_mod.unnormalize(out3, src=(-1, 1), dims=[0, 1, 2]))
    assert jnp.allclose(back3, x3, atol=1e-4, rtol=1e-5)

    print("KERNEL_OK")
</pallas_src>

<mosaic_0001>
module attributes {stable_mosaic.version = 11 : i64} {
  func.func @_range_normalize_kernel(%arg0: i32, %arg1: memref<8x128xf32, #tpu.memory_space<vmem>>, %arg2: memref<1x128xf32, #tpu.memory_space<vmem>>, %arg3: memref<1x128xf32, #tpu.memory_space<vmem>>, %arg4: memref<8x128xf32, #tpu.memory_space<vmem>>) attributes {dimension_semantics = [#tpu.dimension_semantics<parallel>], iteration_bounds = array<i64: 1>, scalar_prefetch = 0 : i64, scratch_operands = 0 : i64, tpu.core_type = #tpu.core_type<tc>, window_params = [{transform_indices = @transform_0, window_bounds = array<i64: 8, 128>}, {pipeline_mode = #tpu.pipeline_mode<synchronous>, transform_indices = @transform_1, window_bounds = array<i64: 1, 128>}, {pipeline_mode = #tpu.pipeline_mode<synchronous>, transform_indices = @transform_2, window_bounds = array<i64: 1, 128>}, {transform_indices = @transform_3, window_bounds = array<i64: 8, 128>}]} {
    %c0 = arith.constant 0 : index
    %c0_0 = arith.constant 0 : index
    %0 = vector.load %arg1[%c0, %c0_0] : memref<8x128xf32, #tpu.memory_space<vmem>>, vector<8x128xf32>
    %c0_1 = arith.constant 0 : index
    %c0_2 = arith.constant 0 : index
    %1 = vector.load %arg2[%c0_1, %c0_2] : memref<1x128xf32, #tpu.memory_space<vmem>>, vector<1x128xf32>
    %2 = vector.broadcast %1 : vector<1x128xf32> to vector<8x128xf32>
    %3 = arith.mulf %0, %2 : vector<8x128xf32>
    %c0_3 = arith.constant 0 : index
    %c0_4 = arith.constant 0 : index
    %4 = vector.load %arg3[%c0_3, %c0_4] : memref<1x128xf32, #tpu.memory_space<vmem>>, vector<1x128xf32>
    %5 = vector.broadcast %4 : vector<1x128xf32> to vector<8x128xf32>
    %6 = arith.addf %3, %5 : vector<8x128xf32>
    %c0_5 = arith.constant 0 : index
    %c0_6 = arith.constant 0 : index
    %7 = vector.load %arg4[%c0_5, %c0_6] : memref<8x128xf32, #tpu.memory_space<vmem>>, vector<8x128xf32>
    tpu.vector_store %arg4[%c0_5, %c0_6], %6 {strides = array<i32>} : memref<8x128xf32, #tpu.memory_space<vmem>>, vector<8x128xf32>,
    return
  }
  func.func @transform_0(%arg0: i32) -> (i32, i32) {
    %c0_i32 = arith.constant 0 : i32
    %c0_i32_0 = arith.constant 0 : i32
    return %arg0, %c0_i32 : i32, i32
  }
  func.func @transform_1(%arg0: i32) -> (i32, i32) {
    %c0_i32 = arith.constant 0 : i32
    %c0_i32_0 = arith.constant 0 : i32
    %c0_i32_1 = arith.constant 0 : i32
    return %c0_i32, %c0_i32_0 : i32, i32
  }
  func.func @transform_2(%arg0: i32) -> (i32, i32) {
    %c0_i32 = arith.constant 0 : i32
    %c0_i32_0 = arith.constant 0 : i32
    %c0_i32_1 = arith.constant 0 : i32
    return %c0_i32, %c0_i32_0 : i32, i32
  }
  func.func @transform_3(%arg0: i32) -> (i32, i32) {
    %c0_i32 = arith.constant 0 : i32
    %c0_i32_0 = arith.constant 0 : i32
    return %arg0, %c0_i32 : i32, i32
  }
}

</mosaic_0001>

<llo_original>
// kernel: tpu_custom_call.1
$region0: #{tpu_custom_call.1}
  #allocation0 [shape = 'u32[]', space=smem, size = 0x4, offset = 0x4, fixed_abs, tag = 'smem constant byte address 0x4 - core index']
  #allocation1 [shape = 'u32[144,128]{1,0:T(1,128)}', space=vmem, size = 0x12000, scoped, tag = 'internal scratch']
  %s0 = inlined_call_operand.hbm [shape: f32[8,128], index: 0, kind: input, shape index: {}]
  %s1 = inlined_call_operand.vmem [shape: f32[1,128], index: 1, kind: input, shape index: {}]
  %s2 = inlined_call_operand.vmem [shape: f32[1,128], index: 2, kind: input, shape index: {}]
  %s3 = inlined_call_operand.hbm [shape: f32[8,128], index: 3, kind: output, shape index: {}]
  %s4 = sld [smem:[#allocation0]]
  $region26: #{tpu_custom_call.1} parent=0
    _
  %s6 = ssub.s32 1, %s4
  %s7 = scalar_select 0, %s6, %s4
  $region1: #{tpu_custom_call.1} parent=0
    #allocation2 [shape = 'u8[4096]{0}', space=vmem, size = 0x1000, scoped, tag = 'input window, operand 0, single buffered']
    #allocation3 [shape = 's32[1]{0}', space=sflag, size = 0x4, scoped, tag = 'scoped memory for tpu_custom_call.1']
    #allocation4 [shape = 's32[1]{0}', space=sflag, size = 0x4, scoped, tag = 'scoped memory for tpu_custom_call.1']
    #allocation5 [shape = 'u8[4096]{0}', space=vmem, size = 0x1000, scoped, tag = 'output window, operand 0, single buffered']
    %8 = vsyncpa [#allocation3], 0
    %9 = vsyncpa [#allocation4], 0
    // Predicated region
    $region2: #{tpu_custom_call.1} parent=1 // pred_check
      _
    $region3: #{tpu_custom_call.1} parent=1 // pred_check_branch
      %11 = sbr.rel (0) target = $region5
    $region4: #{tpu_custom_call.1} parent=1 // pred_region
      %s13 = ssub.s32 128, 128
      %14 = vsyncadd [#allocation3], %s13
      %s16 = sshll.u32 [#allocation2], 4
      %s17 = int_to_ptr.vmem [resolvable:$true] %s16
      %19 = dma.hbm_to_vmem [thread:$0]  %s0, 128, %s17, [#allocation3]
    $region5: #{tpu_custom_call.1} parent=1 // pred_fallthru
      _
    // Predicated region
    $region6: #{tpu_custom_call.1} parent=1 // pred_check
      _
    $region7: #{tpu_custom_call.1} parent=1 // pred_check_branch
      %21 = sbr.rel (0) target = $region9
    $region8: #{tpu_custom_call.1} parent=1 // pred_region
      _
    $region9: #{tpu_custom_call.1} parent=1 // pred_fallthru
      _
    // Predicated region
    $region10: #{tpu_custom_call.1} parent=1 // pred_check
      _
    $region11: #{tpu_custom_call.1} parent=1 // pred_check_branch
      %23 = sbr.rel (0) target = $region13
    $region12: #{tpu_custom_call.1} parent=1 // pred_region
      _
    $region13: #{tpu_custom_call.1} parent=1 // pred_fallthru
      _
    // Predicated region
    $region14: #{tpu_custom_call.1} parent=1 // pred_check
      _
    $region15: #{tpu_custom_call.1} parent=1 // pred_check_branch
      %25 = sbr.rel (0) target = $region17
    $region16: #{tpu_custom_call.1} parent=1 // pred_region
      %26 = dma.done [#allocation3], 128
    $region17: #{tpu_custom_call.1} parent=1 // pred_fallthru
      _
    %v27 = vld [vmem:[#allocation2] sm:$0xff]
    %v28 = vld [vmem:[%s1] sm:$0x1]
    %v30 = vlaneseq
    %v31 = vshrl.u32 %v30, 7
    %v32 = vsub.s32 0, %v31
    %v33 = vrot.slane %v28, %v32
    %v35 = vmul.f32 %v27, %v33
    %v36 = vld [vmem:[%s2] sm:$0x1]
    %v38 = vlaneseq
    %v39 = vshrl.u32 %v38, 7
    %v40 = vsub.s32 0, %v39
    %v41 = vrot.slane %v36, %v40
    %v43 = vadd.f32 %v35, %v41
    %44 = vst [vmem:[#allocation5] sm:$0xff] %v43
    // Predicated region
    $region18: #{tpu_custom_call.1} parent=1 // pred_check
      _
    $region19: #{tpu_custom_call.1} parent=1 // pred_check_branch
      %46 = sbr.rel (0) target = $region21
    $region20: #{tpu_custom_call.1} parent=1 // pred_region
      %s48 = ssub.s32 128, 128
      %49 = vsyncadd [#allocation4], %s48
      %s51 = sshll.u32 [#allocation5], 4
      %s52 = int_to_ptr.vmem [resolvable:$true] %s51
      %54 = dma.vmem_to_hbm [thread:$0]  %s52, 128, %s3, [#allocation4]
    $region21: #{tpu_custom_call.1} parent=1 // pred_fallthru
      _
    // Predicated region
    $region22: #{tpu_custom_call.1} parent=1 // pred_check
      _
    $region23: #{tpu_custom_call.1} parent=1 // pred_check_branch
      %56 = sbr.rel (0) target = $region25
    $region24: #{tpu_custom_call.1} parent=1 // pred_region
      %57 = dma.done [#allocation4], 128
    $region25: #{tpu_custom_call.1} parent=1 // pred_fallthru
      _
    %58 = vsyncpa [#allocation3], 1
    %59 = vsyncpa [#allocation4], 1

</llo_original>
